<compile_context>
chip_gen: v6e
topology: v6e:2x2x1
jax: 0.10.0
libtpu: 0.0.40
codegen_flags: <defaults>
</compile_context>

<pallas_src>
import functools

import jax
import jax.numpy as jnp
from jax import lax
from jax.experimental import pallas as pl
from jax.experimental.pallas import tpu as pltpu

SUBLANE = 8     # f32 sublane group
LANE = 128      # lane width


def _round_up(n, m):
    return ((n + m - 1) // m) * m


def _mlp_kernel(in_features, inner, x_ref, w1_ref, w2_ref, o_ref):
    """x_ref: (Bp, Ip) zero-padded input.
    w1_ref: (Ip, Hp) with row `in_features` holding b1 (bias folded).
    w2_ref: (Hp, Op) with row `inner` holding b2 (bias folded).
    """
    # Inject the "ones" lane that activates the folded b1 row (VPU, free).
    lane_x = lax.broadcasted_iota(jnp.int32, x_ref.shape, 1)
    x = jnp.where(lane_x == in_features, 1.0, x_ref[...])

    # linear1 (+ folded bias) ; relu1
    h = jnp.dot(x, w1_ref[...], preferred_element_type=jnp.float32)
    h = jnp.maximum(h, 0.0)

    # Inject the "ones" lane that activates the folded b2 row.  Column `inner`
    # of h is exactly zero before this (zero column of W1a), padded columns
    # beyond it stay zero, so the augmentation is exact.
    lane_h = lax.broadcasted_iota(jnp.int32, h.shape, 1)
    h = jnp.where(lane_h == inner, 1.0, h)

    # linear2 (+ folded bias) ; relu2
    y = jnp.dot(h, w2_ref[...], preferred_element_type=jnp.float32)
    o_ref[...] = jnp.maximum(y, 0.0).astype(o_ref.dtype)


def prepare_params(w1, b1, w2, b2):
    """Done ONCE at init: pad to lane-aligned shapes and fold biases in as an
    extra weight row.  Weights are stored (in_features, out_features), i.e.
    transposed vs. PyTorch, so the kernel computes y = x @ W."""
    in_features, inner = w1.shape
    inner2, out_features = w2.shape
    assert inner2 == inner

    ip = _round_up(in_features + 1, LANE)   # +1 row for the folded bias
    hp = _round_up(inner + 1, LANE)
    op = _round_up(out_features, LANE)

    w1a = jnp.zeros((ip, hp), jnp.float32)
    w1a = w1a.at[:in_features, :inner].set(w1)
    w1a = w1a.at[in_features, :inner].set(b1.reshape(-1))

    w2a = jnp.zeros((hp, op), jnp.float32)
    w2a = w2a.at[:inner, :out_features].set(w2)
    w2a = w2a.at[inner, :out_features].set(b2.reshape(-1))
    return w1a, w2a


@functools.partial(jax.jit, static_argnums=(3, 4))
def mlp_forward(x, w1a, w2a, inner, out_features):
    batch, in_features = x.shape
    ip, hp = w1a.shape
    hp2, op = w2a.shape
    bp = _round_up(batch, SUBLANE)

    # Single fused pad of the activations (weights are already padded/folded).
    xp = jnp.pad(x.astype(jnp.float32),
                 ((0, bp - batch), (0, ip - in_features)))

    flops = 2 * bp * (ip * hp + hp * op)
    bytes_accessed = 4 * (bp * ip + ip * hp + hp * op + bp * op)

    out_pad = pl.pallas_call(
        functools.partial(_mlp_kernel, in_features, inner),
        out_shape=jax.ShapeDtypeStruct((bp, op), jnp.float32),
        # Whole-array blocks; everything lives in VMEM (a few hundred KiB).
        in_specs=[
            pl.BlockSpec(memory_space=pltpu.VMEM),
            pl.BlockSpec(memory_space=pltpu.VMEM),
            pl.BlockSpec(memory_space=pltpu.VMEM),
        ],
        out_specs=pl.BlockSpec(memory_space=pltpu.VMEM),
        cost_estimate=pl.CostEstimate(
            flops=flops, transcendentals=0, bytes_accessed=bytes_accessed),
    )(xp, w1a, w2a)

    # Lane-dense (unmasked) stores inside the kernel; trim padding here.
    return out_pad[:batch, :out_features]


def init_linear_params(key, in_features, out_features):
    """Deterministic init mimicking torch.nn.Linear defaults:
    U(-1/sqrt(fan_in), 1/sqrt(fan_in)) for both weight and bias."""
    k_w, k_b = jax.random.split(key)
    bound = 1.0 / jnp.sqrt(jnp.float32(in_features))
    # Stored (in_features, out_features) — transposed vs. PyTorch's (out, in).
    w = jax.random.uniform(k_w, (in_features, out_features), jnp.float32,
                           minval=-bound, maxval=bound)
    b = jax.random.uniform(k_b, (out_features,), jnp.float32,
                           minval=-bound, maxval=bound)
    return w, b


if __name__ == "__main__":
    # Shapes implied by the module: input (batch, input_size=16).
    batch = 2
    input_size = 16
    inner_size = 32
    output_size = 8

    key = jax.random.PRNGKey(0)
    k_x, k_l1, k_l2 = jax.random.split(key, 3)

    x = jax.random.normal(k_x, (batch, input_size), jnp.float32)
    w1, b1 = init_linear_params(k_l1, input_size, inner_size)
    w2, b2 = init_linear_params(k_l2, inner_size, output_size)

    # Pad + fold biases once (hoisted out of the per-call path).
    w1a, w2a = prepare_params(w1, b1, w2, b2)

    out = mlp_forward(x, w1a, w2a, inner_size, output_size)
    out = jax.block_until_ready(out)

    # Pure-JAX reference check of the forward semantics.
    ref = jnp.maximum(jnp.maximum(x @ w1 + b1, 0.0) @ w2 + b2, 0.0)
    assert out.shape == (batch, output_size)
    assert jnp.allclose(out, ref, atol=1e-5, rtol=1e-5)

    print("KERNEL_OK")
</pallas_src>

<mosaic_0001>
module attributes {stable_mosaic.version = 11 : i64} {
  func.func @_mlp_kernel(%arg0: memref<8x128xf32, #tpu.memory_space<vmem>>, %arg1: memref<128x128xf32, #tpu.memory_space<vmem>>, %arg2: memref<128x128xf32, #tpu.memory_space<vmem>>, %arg3: memref<8x128xf32, #tpu.memory_space<vmem>>) attributes {dimension_semantics = [], scalar_prefetch = 0 : i64, scratch_operands = 0 : i64, tpu.core_type = #tpu.core_type<tc>} {
    %0 = tpu.iota {dimensions = array<i32: 1>} : vector<8x128xi32>
    %c16_i32 = arith.constant 16 : i32
    %1 = vector.broadcast %c16_i32 : i32 to vector<8x128xi32>
    %2 = arith.cmpi eq, %0, %1 : vector<8x128xi32>
    %c0 = arith.constant 0 : index
    %c0_0 = arith.constant 0 : index
    %3 = vector.load %arg0[%c0, %c0_0] : memref<8x128xf32, #tpu.memory_space<vmem>>, vector<8x128xf32>
    %cst = arith.constant 1.000000e+00 : f32
    %4 = vector.broadcast %cst : f32 to vector<8x128xf32>
    %5 = arith.select %2, %4, %3 : vector<8x128xi1>, vector<8x128xf32>
    %c0_1 = arith.constant 0 : index
    %c0_2 = arith.constant 0 : index
    %6 = vector.load %arg1[%c0_1, %c0_2] : memref<128x128xf32, #tpu.memory_space<vmem>>, vector<128x128xf32>
    %cst_3 = arith.constant dense<0.000000e+00> : vector<8x128xf32>
    %7 = tpu.matmul %5, %6, %cst_3 {dimension_numbers = #tpu.dot_dimension_numbers<[1], [0], [0], [1], [0, 0, 1, 1], [], []>} : vector<8x128xf32>, vector<128x128xf32>, vector<8x128xf32> -> vector<8x128xf32>
    %cst_4 = arith.constant 0.000000e+00 : f32
    %8 = vector.broadcast %cst_4 : f32 to vector<8x128xf32>
    %9 = arith.maximumf %7, %8 : vector<8x128xf32>
    %10 = tpu.iota {dimensions = array<i32: 1>} : vector<8x128xi32>
    %c32_i32 = arith.constant 32 : i32
    %11 = vector.broadcast %c32_i32 : i32 to vector<8x128xi32>
    %12 = arith.cmpi eq, %10, %11 : vector<8x128xi32>
    %cst_5 = arith.constant 1.000000e+00 : f32
    %13 = vector.broadcast %cst_5 : f32 to vector<8x128xf32>
    %14 = arith.select %12, %13, %9 : vector<8x128xi1>, vector<8x128xf32>
    %c0_6 = arith.constant 0 : index
    %c0_7 = arith.constant 0 : index
    %15 = vector.load %arg2[%c0_6, %c0_7] : memref<128x128xf32, #tpu.memory_space<vmem>>, vector<128x128xf32>
    %cst_8 = arith.constant dense<0.000000e+00> : vector<8x128xf32>
    %16 = tpu.matmul %14, %15, %cst_8 {dimension_numbers = #tpu.dot_dimension_numbers<[1], [0], [0], [1], [0, 0, 1, 1], [], []>} : vector<8x128xf32>, vector<128x128xf32>, vector<8x128xf32> -> vector<8x128xf32>
    %cst_9 = arith.constant 0.000000e+00 : f32
    %17 = vector.broadcast %cst_9 : f32 to vector<8x128xf32>
    %18 = arith.maximumf %16, %17 : vector<8x128xf32>
    %c0_10 = arith.constant 0 : index
    %c0_11 = arith.constant 0 : index
    %19 = vector.load %arg3[%c0_10, %c0_11] : memref<8x128xf32, #tpu.memory_space<vmem>>, vector<8x128xf32>
    tpu.vector_store %arg3[%c0_10, %c0_11], %18 {strides = array<i32>} : memref<8x128xf32, #tpu.memory_space<vmem>>, vector<8x128xf32>,
    return
  }
}

</mosaic_0001>

<llo_original>
// kernel: mlp_forward.1
$region0: #{mlp_forward.1}
  #allocation0 [shape = 'u32[]', space=smem, size = 0x4, offset = 0x4, fixed_abs, tag = 'smem constant byte address 0x4 - core index']
  #allocation1 [shape = 'u32[144,128]{1,0:T(1,128)}', space=vmem, size = 0x12000, scoped, tag = 'internal scratch']
  %s0 = inlined_call_operand.vmem [shape: f32[8,128], index: 0, kind: input, shape index: {}]
  %s1 = inlined_call_operand.hbm [shape: f32[128,128], index: 1, kind: input, shape index: {}]
  %s2 = inlined_call_operand.hbm [shape: f32[128,128], index: 2, kind: input, shape index: {}]
  %s3 = inlined_call_operand.vmem [shape: f32[8,128], index: 3, kind: output, shape index: {}]
  %s4 = sld [smem:[#allocation0]]
  $region30: #{mlp_forward.1} parent=0
    _
  %s6 = ssub.s32 1, %s4
  %s7 = scalar_select 0, %s6, %s4
  $region1: #{mlp_forward.1} parent=0
    #allocation2 [shape = 'u8[65536]{0}', space=vmem, size = 0x10000, scoped, tag = 'input window, operand 1, single buffered']
    #allocation3 [shape = 's32[1]{0}', space=sflag, size = 0x4, scoped, tag = 'scoped memory for mlp_forward.1']
    #allocation4 [shape = 'u8[65536]{0}', space=vmem, size = 0x10000, scoped, tag = 'input window, operand 2, single buffered']
    #allocation5 [shape = 's32[1]{0}', space=sflag, size = 0x4, scoped, tag = 'scoped memory for mlp_forward.1']
    %8 = vsyncpa [#allocation3], 0
    %9 = vsyncpa [#allocation5], 0
    // Predicated region
    $region2: #{mlp_forward.1} parent=1 // pred_check
      _
    $region3: #{mlp_forward.1} parent=1 // pred_check_branch
      %11 = sbr.rel (0) target = $region5
    $region4: #{mlp_forward.1} parent=1 // pred_region
      _
    $region5: #{mlp_forward.1} parent=1 // pred_fallthru
      _
    // Predicated region
    $region6: #{mlp_forward.1} parent=1 // pred_check
      _
    $region7: #{mlp_forward.1} parent=1 // pred_check_branch
      %13 = sbr.rel (0) target = $region9
    $region8: #{mlp_forward.1} parent=1 // pred_region
      %s15 = ssub.s32 2048, 2048
      %16 = vsyncadd [#allocation3], %s15
      %s17 = sshll.u32 [#allocation2], 4
      %s18 = int_to_ptr.vmem [resolvable:$true] %s17
      %23 = dma.hbm_to_vmem [thread:$0]  %s1, 2048, %s18, [#allocation3], 128, 128, 8
    $region9: #{mlp_forward.1} parent=1 // pred_fallthru
      _
    // Predicated region
    $region10: #{mlp_forward.1} parent=1 // pred_check
      _
    $region11: #{mlp_forward.1} parent=1 // pred_check_branch
      %25 = sbr.rel (0) target = $region13
    $region12: #{mlp_forward.1} parent=1 // pred_region
      %s27 = ssub.s32 2048, 2048
      %28 = vsyncadd [#allocation5], %s27
      %s29 = sshll.u32 [#allocation4], 4
      %s30 = int_to_ptr.vmem [resolvable:$true] %s29
      %35 = dma.hbm_to_vmem [thread:$0]  %s2, 2048, %s30, [#allocation5], 128, 128, 8
    $region13: #{mlp_forward.1} parent=1 // pred_fallthru
      _
    // Predicated region
    $region14: #{mlp_forward.1} parent=1 // pred_check
      _
    $region15: #{mlp_forward.1} parent=1 // pred_check_branch
      %37 = sbr.rel (0) target = $region17
    $region16: #{mlp_forward.1} parent=1 // pred_region
      %38 = dma.done [#allocation3], 2048
    $region17: #{mlp_forward.1} parent=1 // pred_fallthru
      _
    // Predicated region
    $region18: #{mlp_forward.1} parent=1 // pred_check
      _
    $region19: #{mlp_forward.1} parent=1 // pred_check_branch
      %40 = sbr.rel (0) target = $region21
    $region20: #{mlp_forward.1} parent=1 // pred_region
      %41 = dma.done [#allocation5], 2048
    $region21: #{mlp_forward.1} parent=1 // pred_fallthru
      _
    %v42 = vlaneseq
    %v43 = vand.u32 %v42, 127
    %vm44 = vcmp.eq.s32.totalorder %v43, 16
    %v45 = vld [vmem:[%s0] sm:$0xff]
    %v46 = vsel %vm44, 1.0, %v45
    %v47 = vld [vmem:[#allocation2] sm:$0xff]
    %v48 = vld [vmem:[#allocation2 + $0x8] sm:$0xff]
    %v49 = vld [vmem:[#allocation2 + $0x10] sm:$0xff]
    %v50 = vld [vmem:[#allocation2 + $0x18] sm:$0xff]
    %v51 = vld [vmem:[#allocation2 + $0x20] sm:$0xff]
    %v52 = vld [vmem:[#allocation2 + $0x28] sm:$0xff]
    %v53 = vld [vmem:[#allocation2 + $0x30] sm:$0xff]
    %v54 = vld [vmem:[#allocation2 + $0x38] sm:$0xff]
    %v55 = vld [vmem:[#allocation2 + $0x40] sm:$0xff]
    %v56 = vld [vmem:[#allocation2 + $0x48] sm:$0xff]
    %v57 = vld [vmem:[#allocation2 + $0x50] sm:$0xff]
    %v58 = vld [vmem:[#allocation2 + $0x58] sm:$0xff]
    %v59 = vld [vmem:[#allocation2 + $0x60] sm:$0xff]
    %v60 = vld [vmem:[#allocation2 + $0x68] sm:$0xff]
    %v61 = vld [vmem:[#allocation2 + $0x70] sm:$0xff]
    %v62 = vld [vmem:[#allocation2 + $0x78] sm:$0xff]
    %63 = vmatprep.subr.mxu0 0.0
    %64 = vmatpush1.msra.mxu0 %v62
    %65 = vmatprep.subr.mxu0 0.0
    %66 = vmatpush1.msra.mxu0 %v61
    %67 = vmatprep.subr.mxu0 0.0
    %68 = vmatpush1.msra.mxu0 %v60
    %69 = vmatprep.subr.mxu0 0.0
    %70 = vmatpush1.msra.mxu0 %v59
    %71 = vmatprep.subr.mxu0 0.0
    %72 = vmatpush1.msra.mxu0 %v58
    %73 = vmatprep.subr.mxu0 0.0
    %74 = vmatpush1.msra.mxu0 %v57
    %75 = vmatprep.subr.mxu0 0.0
    %76 = vmatpush1.msra.mxu0 %v56
    %77 = vmatprep.subr.mxu0 0.0
    %78 = vmatpush1.msra.mxu0 %v55
    %79 = vmatprep.subr.mxu0 0.0
    %80 = vmatpush1.msra.mxu0 %v54
    %81 = vmatprep.subr.mxu0 0.0
    %82 = vmatpush1.msra.mxu0 %v53
    %83 = vmatprep.subr.mxu0 0.0
    %84 = vmatpush1.msra.mxu0 %v52
    %85 = vmatprep.subr.mxu0 0.0
    %86 = vmatpush1.msra.mxu0 %v51
    %87 = vmatprep.subr.mxu0 0.0
    %88 = vmatpush1.msra.mxu0 %v50
    %89 = vmatprep.subr.mxu0 0.0
    %90 = vmatpush1.msra.mxu0 %v49
    %91 = vmatprep.subr.mxu0 0.0
    %92 = vmatpush1.msra.mxu0 %v48
    %93 = vmatprep.subr.mxu0 0.0
    %94 = vmatpush1.msra.mxu0 %v47
    %95 = vmatprep.subr.mxu0 0.0
    %96 = vmatpush2.msra.mxu0 0.0
    %97 = vmatprep.subr.mxu0 0.0
    %98 = vmatpush2.msra.mxu0 0.0
    %99 = vmatprep.subr.mxu0 0.0
    %100 = vmatpush2.msra.mxu0 0.0
    %101 = vmatprep.subr.mxu0 0.0
    %102 = vmatpush2.msra.mxu0 0.0
    %103 = vmatprep.subr.mxu0 0.0
    %104 = vmatpush2.msra.mxu0 0.0
    %105 = vmatprep.subr.mxu0 0.0
    %106 = vmatpush2.msra.mxu0 0.0
    %107 = vmatprep.subr.mxu0 0.0
    %108 = vmatpush2.msra.mxu0 0.0
    %109 = vmatprep.subr.mxu0 0.0
    %110 = vmatpush2.msra.mxu0 0.0
    %111 = vmatprep.subr.mxu0 0.0
    %112 = vmatpush2.msra.mxu0 0.0
    %113 = vmatprep.subr.mxu0 0.0
    %114 = vmatpush2.msra.mxu0 0.0
    %115 = vmatprep.subr.mxu0 0.0
    %116 = vmatpush2.msra.mxu0 0.0
    %117 = vmatprep.subr.mxu0 0.0
    %118 = vmatpush2.msra.mxu0 0.0
    %119 = vmatprep.subr.mxu0 0.0
    %120 = vmatpush2.msra.mxu0 0.0
    %121 = vmatprep.subr.mxu0 0.0
    %122 = vmatpush2.msra.mxu0 0.0
    %123 = vmatprep.subr.mxu0 0.0
    %124 = vmatpush2.msra.mxu0 0.0
    %125 = vmatprep.subr.mxu0 0.0
    %126 = vmatpush2.msra.mxu0 0.0
    %127 = vmatprep.mubr.f32.mxu0 0.0
    %128 = vmatmul.mubr.f32.gmra.mxu0 %v46
    %v129 = vpop.f32.mrf.mxu0
    %v130 = vadd.f32 0.0, %v129
    %v131 = vpop.f32.mrf.mxu0
    %132 = vdwg.mxu0
    %v133 = vmax.f32 %v130, 0.0
    %vm134 = vcmp.eq.s32.totalorder %v43, 32
    %v135 = vsel %vm134, 1.0, %v133
    %v136 = vld [vmem:[#allocation4] sm:$0xff]
    %v137 = vld [vmem:[#allocation4 + $0x8] sm:$0xff]
    %v138 = vld [vmem:[#allocation4 + $0x10] sm:$0xff]
    %v139 = vld [vmem:[#allocation4 + $0x18] sm:$0xff]
    %v140 = vld [vmem:[#allocation4 + $0x20] sm:$0xff]
    %v141 = vld [vmem:[#allocation4 + $0x28] sm:$0xff]
    %v142 = vld [vmem:[#allocation4 + $0x30] sm:$0xff]
    %v143 = vld [vmem:[#allocation4 + $0x38] sm:$0xff]
    %v144 = vld [vmem:[#allocation4 + $0x40] sm:$0xff]
    %v145 = vld [vmem:[#allocation4 + $0x48] sm:$0xff]
    %v146 = vld [vmem:[#allocation4 + $0x50] sm:$0xff]
    %v147 = vld [vmem:[#allocation4 + $0x58] sm:$0xff]
    %v148 = vld [vmem:[#allocation4 + $0x60] sm:$0xff]
    %v149 = vld [vmem:[#allocation4 + $0x68] sm:$0xff]
    %v150 = vld [vmem:[#allocation4 + $0x70] sm:$0xff]
    %v151 = vld [vmem:[#allocation4 + $0x78] sm:$0xff]
    %152 = vmatprep.subr.mxu0 0.0
    %153 = vmatpush1.msra.mxu0 %v151
    %154 = vmatprep.subr.mxu0 0.0
    %155 = vmatpush1.msra.mxu0 %v150
    %156 = vmatprep.subr.mxu0 0.0
    %157 = vmatpush1.msra.mxu0 %v149
    %158 = vmatprep.subr.mxu0 0.0
    %159 = vmatpush1.msra.mxu0 %v148
    %160 = vmatprep.subr.mxu0 0.0
    %161 = vmatpush1.msra.mxu0 %v147
    %162 = vmatprep.subr.mxu0 0.0
    %163 = vmatpush1.msra.mxu0 %v146
    %164 = vmatprep.subr.mxu0 0.0
    %165 = vmatpush1.msra.mxu0 %v145
    %166 = vmatprep.subr.mxu0 0.0
    %167 = vmatpush1.msra.mxu0 %v144
    %168 = vmatprep.subr.mxu0 0.0
    %169 = vmatpush1.msra.mxu0 %v143
    %170 = vmatprep.subr.mxu0 0.0
    %171 = vmatpush1.msra.mxu0 %v142
    %172 = vmatprep.subr.mxu0 0.0
    %173 = vmatpush1.msra.mxu0 %v141
    %174 = vmatprep.subr.mxu0 0.0
    %175 = vmatpush1.msra.mxu0 %v140
    %176 = vmatprep.subr.mxu0 0.0
    %177 = vmatpush1.msra.mxu0 %v139
    %178 = vmatprep.subr.mxu0 0.0
    %179 = vmatpush1.msra.mxu0 %v138
    %180 = vmatprep.subr.mxu0 0.0
    %181 = vmatpush1.msra.mxu0 %v137
    %182 = vmatprep.subr.mxu0 0.0
    %183 = vmatpush1.msra.mxu0 %v136
    %184 = vmatprep.subr.mxu0 0.0
    %185 = vmatpush2.msra.mxu0 0.0
    %186 = vmatprep.subr.mxu0 0.0
    %187 = vmatpush2.msra.mxu0 0.0
    %188 = vmatprep.subr.mxu0 0.0
    %189 = vmatpush2.msra.mxu0 0.0
    %190 = vmatprep.subr.mxu0 0.0
    %191 = vmatpush2.msra.mxu0 0.0
    %192 = vmatprep.subr.mxu0 0.0
    %193 = vmatpush2.msra.mxu0 0.0
    %194 = vmatprep.subr.mxu0 0.0
    %195 = vmatpush2.msra.mxu0 0.0
    %196 = vmatprep.subr.mxu0 0.0
    %197 = vmatpush2.msra.mxu0 0.0
    %198 = vmatprep.subr.mxu0 0.0
    %199 = vmatpush2.msra.mxu0 0.0
    %200 = vmatprep.subr.mxu0 0.0
    %201 = vmatpush2.msra.mxu0 0.0
    %202 = vmatprep.subr.mxu0 0.0
    %203 = vmatpush2.msra.mxu0 0.0
    %204 = vmatprep.subr.mxu0 0.0
    %205 = vmatpush2.msra.mxu0 0.0
    %206 = vmatprep.subr.mxu0 0.0
    %207 = vmatpush2.msra.mxu0 0.0
    %208 = vmatprep.subr.mxu0 0.0
    %209 = vmatpush2.msra.mxu0 0.0
    %210 = vmatprep.subr.mxu0 0.0
    %211 = vmatpush2.msra.mxu0 0.0
    %212 = vmatprep.subr.mxu0 0.0
    %213 = vmatpush2.msra.mxu0 0.0
    %214 = vmatprep.subr.mxu0 0.0
    %215 = vmatpush2.msra.mxu0 0.0
    %216 = vmatprep.mubr.f32.mxu0 0.0
    %217 = vmatmul.mubr.f32.gmra.mxu0 %v135
    %v218 = vpop.f32.mrf.mxu0
    %v219 = vadd.f32 0.0, %v218
    %v220 = vpop.f32.mrf.mxu0
    %221 = vdwg.mxu0
    %v222 = vmax.f32 %v219, 0.0
    %223 = vst [vmem:[%s3] sm:$0xff] %v222
    // Predicated region
    $region22: #{mlp_forward.1} parent=1 // pred_check
      _
    $region23: #{mlp_forward.1} parent=1 // pred_check_branch
      %225 = sbr.rel (0) target = $region25
    $region24: #{mlp_forward.1} parent=1 // pred_region
      _
    $region25: #{mlp_forward.1} parent=1 // pred_fallthru
      _
    // Predicated region
    $region26: #{mlp_forward.1} parent=1 // pred_check
      _
    $region27: #{mlp_forward.1} parent=1 // pred_check_branch
      %227 = sbr.rel (0) target = $region29
    $region28: #{mlp_forward.1} parent=1 // pred_region
      _
    $region29: #{mlp_forward.1} parent=1 // pred_fallthru
      _
    %228 = vsyncpa [#allocation3], 1
    %229 = vsyncpa [#allocation5], 1

</llo_original>
